<compile_context>
chip_gen: v7x
topology: tpu7x:2x2x1
jax: 0.10.0
libtpu: 0.0.40
codegen_flags: <defaults>
</compile_context>

<pallas_src>
from functools import partial

import jax
import jax.numpy as jnp
from jax.experimental import pallas as pl
from jax.experimental.pallas import tpu as pltpu


def _round_up(x: int, m: int) -> int:
    return ((x + m - 1) // m) * m


def _tpu_vmem_capacity_bytes() -> int:
    """Per-core VMEM capacity; conservative (v7x-sized) fallback if unknown."""
    try:
        return int(pltpu.get_tpu_info().vmem_capacity_bytes)
    except Exception:
        return 64 * 1024 * 1024


def _choose_tile_n(n: int, c: int, itemsize: int, vmem_limit_bytes: int) -> int:
    """Largest row tile whose total VMEM footprint fits the budget.

    Footprint per row ~= C * (2 * itemsize        # double-buffered input tile
                              + 4 * 4)            # ~4 full-width f32/i32 temps
    Budget = 70% of vmem_limit_bytes (headroom for pipeline/internal scratch).
    Rows are rounded to 16 for bf16 (sublane-packed pairs), 8 for f32.
    """
    align = 8 if itemsize >= 4 else (16 if itemsize == 2 else 32)
    per_row_bytes = max(1, c * (2 * itemsize + 4 * 4))
    budget = int(vmem_limit_bytes * 0.7)
    rows = max(align, (budget // per_row_bytes) // align * align)
    rows = min(rows, _round_up(n, align))
    return max(align, rows)


def _ce_partial_kernel(logits_ref, labels_ref, partial_ref, *, n_total, tile_n):
    """Writes the partial sum of -log_softmax(logits)[i, labels[i]] for this tile.

    logits_ref:  (tile_n, C) float (f32 or bf16; upcast to f32 in-kernel)
    labels_ref:  (tile_n, 1) int32
    partial_ref: (1, 8, 128) float32 output block (scalar partial, broadcast)
    """
    i = pl.program_id(0)

    logits = logits_ref[...].astype(jnp.float32)                   # (tile_n, C)
    labels = labels_ref[...]                                        # (tile_n, 1)

    # Target logit via lane-iota masked select against the raw logits
    # (no one-hot cast+mul, no data-dependent gather).
    col_ids = jax.lax.broadcasted_iota(jnp.int32, logits.shape, 1)  # (tile_n, C)
    tgt = jnp.sum(jnp.where(col_ids == labels, logits, 0.0),
                  axis=-1, keepdims=True)                           # (tile_n, 1)

    # Numerically-stable logsumexp.
    m = jnp.max(logits, axis=-1, keepdims=True)                     # (tile_n, 1)
    sum_exp = jnp.sum(jnp.exp(logits - m), axis=-1, keepdims=True)  # (tile_n, 1)

    per_row = (m + jnp.log(sum_exp)) - tgt                          # (tile_n, 1)

    # Mask padded rows of a ragged last tile (select discards garbage/NaN).
    row_ids = i * tile_n + jax.lax.broadcasted_iota(jnp.int32, per_row.shape, 0)
    per_row = jnp.where(row_ids < n_total, per_row, 0.0)

    # Lane-dense output block: broadcast the tile's partial sum; the wrapper
    # reads element [i, 0, 0] of each block and reduces outside the kernel.
    partial_ref[...] = jnp.full(partial_ref.shape, jnp.sum(per_row),
                                dtype=jnp.float32)


def cross_entropy(y_pred: jax.Array, y_true: jax.Array, *,
                  tile_n: int | None = None) -> jax.Array:
    """Softmax cross-entropy, mean over the batch.

    y_pred: (N, C) float logits (f32 or bf16 — feed bf16 from the producer to
            halve HBM traffic; do not cast here, that would add an HBM pass)
    y_true: (N,)   integer class labels in [0, C)
    returns: scalar float32 loss
    """
    N, C = y_pred.shape
    labels = y_true.astype(jnp.int32).reshape(N, 1)
    itemsize = y_pred.dtype.itemsize

    vmem_cap = _tpu_vmem_capacity_bytes()
    # Leave headroom for Mosaic internal scratch / pipeline buffers:
    # ~48 MiB on v7x (64 MiB VMEM), ~112 MiB on v5e/v6e (128 MiB VMEM).
    vmem_limit = max(32 * 1024 * 1024, vmem_cap - 16 * 1024 * 1024)

    if tile_n is None:
        tile_n = _choose_tile_n(N, C, itemsize, vmem_limit)
    num_blocks = pl.cdiv(N, tile_n)

    kernel = partial(_ce_partial_kernel, n_total=N, tile_n=tile_n)

    partials = pl.pallas_call(
        kernel,
        out_shape=jax.ShapeDtypeStruct((num_blocks, 8, 128), jnp.float32),
        grid=(num_blocks,),
        in_specs=[
            pl.BlockSpec((tile_n, C), lambda i: (i, 0)),   # logits tile
            pl.BlockSpec((tile_n, 1), lambda i: (i, 0)),   # labels tile
        ],
        # Distinct output block per grid step -> no cross-step dependency,
        # so the batch axis can be sharded across TensorCores (v7x megacore).
        out_specs=pl.BlockSpec((1, 8, 128), lambda i: (i, 0, 0)),
        compiler_params=pltpu.CompilerParams(
            dimension_semantics=("parallel",),
            vmem_limit_bytes=int(vmem_limit),
        ),
    )(y_pred, labels)

    # Final (tiny) reduction + reduction='mean' over the TOTAL row count.
    return jnp.sum(partials[:, 0, 0]) / N


def _reference(y_pred, y_true):
    log_probs = jax.nn.log_softmax(y_pred.astype(jnp.float32), axis=-1)
    n = y_pred.shape[0]
    return -jnp.mean(log_probs[jnp.arange(n), y_true])


if __name__ == "__main__":
    key = jax.random.PRNGKey(0)
    k1, k2, k3, k4 = jax.random.split(key, 4)

    # Small demo shape consistent with the module's (N, C) contract.
    N, C = 8, 32
    y_pred = jax.random.normal(k1, (N, C), dtype=jnp.float32)
    y_true = jax.random.randint(k2, (N,), 0, C, dtype=jnp.int32)

    loss = cross_entropy(y_pred, y_true)
    jax.block_until_ready(loss)
    ref = _reference(y_pred, y_true)
    assert jnp.allclose(loss, ref, atol=1e-5, rtol=1e-5), (loss, ref)

    # Exercise the tiled / parallel-partials path: multi-block grid with a
    # ragged last tile (300 % 128 != 0 -> grid=(3,)).
    N2, C2 = 300, 256
    y_pred2 = jax.random.normal(k3, (N2, C2), dtype=jnp.float32)
    y_true2 = jax.random.randint(k4, (N2,), 0, C2, dtype=jnp.int32)

    loss2 = cross_entropy(y_pred2, y_true2, tile_n=128)
    jax.block_until_ready(loss2)
    ref2 = _reference(y_pred2, y_true2)
    assert jnp.allclose(loss2, ref2, atol=1e-5, rtol=1e-5), (loss2, ref2)

    # bf16-logits path (auto tile sizing rounds rows to 16): loose tolerance.
    loss3 = cross_entropy(y_pred2.astype(jnp.bfloat16), y_true2)
    jax.block_until_ready(loss3)
    assert jnp.allclose(loss3, ref2, atol=5e-2, rtol=5e-2), (loss3, ref2)

    print("KERNEL_OK")
</pallas_src>

<mosaic_0001>
module attributes {stable_mosaic.version = 11 : i64} {
  func.func @_ce_partial_kernel(%arg0: i32, %arg1: memref<8x32xf32, #tpu.memory_space<vmem>>, %arg2: memref<8x1xi32, #tpu.memory_space<vmem>>, %arg3: memref<1x8x128xf32, #tpu.memory_space<vmem>>) attributes {dimension_semantics = [#tpu.dimension_semantics<parallel>], iteration_bounds = array<i64: 1>, scalar_prefetch = 0 : i64, scratch_operands = 0 : i64, tpu.core_type = #tpu.core_type<tc>, window_params = [{transform_indices = @transform_0, window_bounds = array<i64: 8, 32>}, {transform_indices = @transform_1, window_bounds = array<i64: 8, 1>}, {transform_indices = @transform_2, window_bounds = array<i64: 1, 8, 128>}]} {
    %c0 = arith.constant 0 : index
    %c0_0 = arith.constant 0 : index
    %0 = vector.load %arg1[%c0, %c0_0] : memref<8x32xf32, #tpu.memory_space<vmem>>, vector<8x32xf32>
    %c0_1 = arith.constant 0 : index
    %c0_2 = arith.constant 0 : index
    %1 = vector.load %arg2[%c0_1, %c0_2] : memref<8x1xi32, #tpu.memory_space<vmem>>, vector<8x1xi32>
    %2 = tpu.iota {dimensions = array<i32: 1>} : vector<8x32xi32>
    %3 = vector.broadcast %1 : vector<8x1xi32> to vector<8x32xi32>
    %4 = arith.cmpi eq, %2, %3 : vector<8x32xi32>
    %cst = arith.constant 0.000000e+00 : f32
    %5 = vector.broadcast %cst : f32 to vector<8x32xf32>
    %6 = arith.select %4, %0, %5 : vector<8x32xi1>, vector<8x32xf32>
    %cst_3 = arith.constant dense<0.000000e+00> : vector<8xf32>
    %7 = vector.multi_reduction <add>, %6, %cst_3 [1] : vector<8x32xf32> to vector<8xf32>
    %8 = vector.shape_cast %7 : vector<8xf32> to vector<8x1xf32>
    %cst_4 = arith.constant dense<0xFF800000> : vector<8xf32>
    %9 = vector.multi_reduction <maximumf>, %0, %cst_4 [1] : vector<8x32xf32> to vector<8xf32>
    %10 = vector.shape_cast %9 : vector<8xf32> to vector<8x1xf32>
    %11 = vector.broadcast %10 : vector<8x1xf32> to vector<8x32xf32>
    %12 = arith.subf %0, %11 : vector<8x32xf32>
    %13 = math.exp %12 : vector<8x32xf32>
    %cst_5 = arith.constant dense<0.000000e+00> : vector<8xf32>
    %14 = vector.multi_reduction <add>, %13, %cst_5 [1] : vector<8x32xf32> to vector<8xf32>
    %15 = vector.shape_cast %14 : vector<8xf32> to vector<8x1xf32>
    %16 = math.log %15 : vector<8x1xf32>
    %17 = arith.addf %10, %16 : vector<8x1xf32>
    %18 = arith.subf %17, %8 : vector<8x1xf32>
    %c8_i32 = arith.constant 8 : i32
    %19 = arith.muli %arg0, %c8_i32 : i32
    %20 = tpu.iota {dimensions = array<i32: 0>} : vector<8x1xi32>
    %21 = vector.broadcast %19 : i32 to vector<8x1xi32>
    %22 = arith.addi %21, %20 : vector<8x1xi32>
    %c8_i32_6 = arith.constant 8 : i32
    %23 = vector.broadcast %c8_i32_6 : i32 to vector<8x1xi32>
    %24 = arith.cmpi slt, %22, %23 : vector<8x1xi32>
    %cst_7 = arith.constant 0.000000e+00 : f32
    %25 = vector.broadcast %cst_7 : f32 to vector<8x1xf32>
    %26 = arith.select %24, %18, %25 : vector<8x1xi1>, vector<8x1xf32>
    %27 = vector.shape_cast %26 : vector<8x1xf32> to vector<1x8x1xf32>
    %cst_8 = arith.constant dense<0.000000e+00> : vector<1xf32>
    %28 = vector.multi_reduction <add>, %27, %cst_8 [1, 2] : vector<1x8x1xf32> to vector<1xf32>
    %29 = vector.shape_cast %28 : vector<1xf32> to vector<1x1x1xf32>
    %30 = vector.extract %29[0, 0, 0] : f32 from vector<1x1x1xf32>
    %31 = vector.broadcast %30 : f32 to vector<1x8x128xf32>
    %c0_9 = arith.constant 0 : index
    %c0_10 = arith.constant 0 : index
    %c0_11 = arith.constant 0 : index
    %32 = vector.load %arg3[%c0_9, %c0_10, %c0_11] : memref<1x8x128xf32, #tpu.memory_space<vmem>>, vector<1x8x128xf32>
    tpu.vector_store %arg3[%c0_9, %c0_10, %c0_11], %31 {strides = array<i32>} : memref<1x8x128xf32, #tpu.memory_space<vmem>>, vector<1x8x128xf32>,
    return
  }
  func.func @transform_0(%arg0: i32) -> (i32, i32) {
    %c0_i32 = arith.constant 0 : i32
    %c0_i32_0 = arith.constant 0 : i32
    return %arg0, %c0_i32 : i32, i32
  }
  func.func @transform_1(%arg0: i32) -> (i32, i32) {
    %c0_i32 = arith.constant 0 : i32
    %c0_i32_0 = arith.constant 0 : i32
    return %arg0, %c0_i32 : i32, i32
  }
  func.func @transform_2(%arg0: i32) -> (i32, i32, i32) {
    %c0_i32 = arith.constant 0 : i32
    %c0_i32_0 = arith.constant 0 : i32
    %c0_i32_1 = arith.constant 0 : i32
    return %arg0, %c0_i32, %c0_i32_0 : i32, i32, i32
  }
}

</mosaic_0001>

<llo_original>
// kernel: tpu_custom_call.1
$region0: #{tpu_custom_call.1}
  #allocation0 [shape = 'u32[]', space=smem, size = 0x4, offset = 0x4, fixed_abs, tag = 'smem constant byte address 0x4 - core index']
  #allocation1 [shape = 'u32[144,128]{1,0:T(1,128)}', space=vmem, size = 0x12000, scoped, tag = 'internal scratch']
  %s0 = inlined_call_operand.vmem [shape: f32[8,32], index: 0, kind: input, shape index: {}]
  %s1 = inlined_call_operand.vmem [shape: s32[8,1], index: 1, kind: input, shape index: {}]
  %s2 = inlined_call_operand.hbm [shape: f32[1,8,128], index: 2, kind: output, shape index: {}]
  %s3 = sld [smem:[#allocation0]]
  $region18: #{tpu_custom_call.1} parent=0
    _
  %s5 = ssub.s32 1, %s3
  %s6 = scalar_select 0, %s5, %s3
  $region1: #{tpu_custom_call.1} parent=0
    #allocation2 [shape = 'u8[4096]{0}', space=vmem, size = 0x1000, scoped, tag = 'output window, operand 0, single buffered']
    #allocation3 [shape = 's32[1]{0}', space=sflag, size = 0x4, scoped, tag = 'scoped memory for tpu_custom_call.1']
    %7 = vsyncpa [#allocation3], 0
    // Predicated region
    $region2: #{tpu_custom_call.1} parent=1 // pred_check
      _
    $region3: #{tpu_custom_call.1} parent=1 // pred_check_branch
      %9 = sbr.rel (0) target = $region5
    $region4: #{tpu_custom_call.1} parent=1 // pred_region
      _
    $region5: #{tpu_custom_call.1} parent=1 // pred_fallthru
      _
    // Predicated region
    $region6: #{tpu_custom_call.1} parent=1 // pred_check
      _
    $region7: #{tpu_custom_call.1} parent=1 // pred_check_branch
      %11 = sbr.rel (0) target = $region9
    $region8: #{tpu_custom_call.1} parent=1 // pred_region
      _
    $region9: #{tpu_custom_call.1} parent=1 // pred_fallthru
      _
    %v12 = vld [vmem:[%s0] sm:$0xff]
    %v13 = vld [vmem:[%s1] sm:$0xff]
    %v14 = vlaneseq
    %v15 = vand.u32 %v14, 127
    %16 = vset.pattern.permute.xlu0 0
    %17 = vperm.xlu0 %16, %v13
    %v18 = vpop.permute.xlu0 %17
    %vm19 = vcmp.eq.s32.totalorder %v15, %v18
    %v20 = vsel %vm19, %v12, 0.0
    %vm21 = vcmask 261120
    %v22 = vsel %vm21, %v20, 0.0
    %23 = vadd.xlane.f32.xlu0 %v22
    %v24 = vpop.xlane.xlu0 %23
    %v25 = vsel %vm21, %v12, -inf
    %26 = vmax.xlane.f32.xlu0 %v25
    %v27 = vpop.xlane.xlu0 %26
    %v28 = vsub.f32 %v12, %v27
    %v29 = vmul.f32 %v28, 1.442695
    %v30 = vpow.pop %v29
    %v31 = vsel %vm21, %v30, 0.0
    %32 = vadd.xlane.f32.xlu0 %v31
    %v33 = vpop.xlane.xlu0 %32
    %v34 = vlog2.pop %v33
    %v35 = vmul.f32 %v34, 0.6931472
    %v36 = vadd.f32 %v27, %v35
    %v37 = vsub.f32 %v36, %v24
    %s38 = smul.u32 0, 8
    %v39 = vlaneseq
    %v40 = vshrl.u32 %v39, 7
    %v41 = vstv %s38
    %v42 = vadd.s32 %v41, %v40
    %vm43 = vcmp.lt.s32.totalorder %v42, 8
    %v44 = vsel %vm43, %v37, 0.0
    %vm45 = vcmask 7168
    %v46 = vsel %vm45, %v44, 0.0
    %47 = vadd.xlane.f32.xlu0 %v46
    %v48 = vpop.xlane.xlu0 %47
    %v49 = vrot.slane %v48, 4
    %v50 = vadd.f32 %v48, %v49
    %v51 = vrot.slane %v50, 2
    %v52 = vadd.f32 %v50, %v51
    %v53 = vrot.slane %v52, 1
    %v54 = vadd.f32 %v52, %v53
    %s55 = vtos %v54
    %v56 = vstv %s55
    %57 = vst [vmem:[#allocation2] sm:$0xff] %v56
    // Predicated region
    $region10: #{tpu_custom_call.1} parent=1 // pred_check
      _
    $region11: #{tpu_custom_call.1} parent=1 // pred_check_branch
      %59 = sbr.rel (0) target = $region13
    $region12: #{tpu_custom_call.1} parent=1 // pred_region
      %s61 = ssub.s32 128, 128
      %62 = vsyncadd [#allocation3], %s61
      %s64 = sshll.u32 [#allocation2], 4
      %s65 = int_to_ptr.vmem [resolvable:$true] %s64
      %67 = dma.vmem_to_hbm [thread:$0]  %s65, 128, %s2, [#allocation3]
    $region13: #{tpu_custom_call.1} parent=1 // pred_fallthru
      _
    // Predicated region
    $region14: #{tpu_custom_call.1} parent=1 // pred_check
      _
    $region15: #{tpu_custom_call.1} parent=1 // pred_check_branch
      %69 = sbr.rel (0) target = $region17
    $region16: #{tpu_custom_call.1} parent=1 // pred_region
      %70 = dma.done [#allocation3], 128
    $region17: #{tpu_custom_call.1} parent=1 // pred_fallthru
      _
    %71 = vsyncpa [#allocation3], 1

</llo_original>
